<compile_context>
chip_gen: v7x
topology: tpu7x:2x2x1
jax: 0.10.0
libtpu: 0.0.40
codegen_flags: <defaults>
</compile_context>

<pallas_src>
import functools

import jax
import jax.numpy as jnp
from jax.experimental import pallas as pl
from jax.experimental.pallas import tpu as pltpu

_LN_EPS = 1e-5  # nn.LayerNorm default eps


def _transformer_block_kernel(x_ref, wqkv_ref, bqkv_ref, wo_ref, bo_ref,
                              lnw_ref, lnb_ref, out_ref, *, compute_dtype):
    h = pl.program_id(1)
    B, L, E = x_ref.shape                       # (batch_tile, seq, embed)
    rows = B * L
    d = wo_ref.shape[1]                         # head dim

    x = x_ref[...]                              # (B, L, E) f32 (kept for gate + LN)
    xm = x.reshape(rows, E).astype(compute_dtype)

    # ---- this head's Q/K/V projections (1/sqrt(d) already folded into the Q weight/bias) --
    wqkv = wqkv_ref[...]                        # (1, 3, E, d) compute_dtype
    bqkv = bqkv_ref[...]                        # (1, 3, 1, d) f32
    q = (jnp.dot(xm, wqkv[0, 0], preferred_element_type=jnp.float32) + bqkv[0, 0]).reshape(B, L, d)
    k = (jnp.dot(xm, wqkv[0, 1], preferred_element_type=jnp.float32) + bqkv[0, 1]).reshape(B, L, d)
    v = (jnp.dot(xm, wqkv[0, 2], preferred_element_type=jnp.float32) + bqkv[0, 2]).reshape(B, L, d)

    # ---- attention for this head, batched over the batch dim (3-D einsum flash pattern) ---
    s = jnp.einsum('nld,nmd->nlm', q.astype(compute_dtype), k.astype(compute_dtype),
                   preferred_element_type=jnp.float32)            # (B, L, L) f32
    m = jnp.max(s, axis=-1, keepdims=True)
    e = jnp.exp(s - m)
    den = jnp.sum(e, axis=-1, keepdims=True)
    inv = pl.reciprocal(den, approx=True)                         # EUP seed
    inv = inv * (2.0 - den * inv)                                 # one Newton step
    p = e * inv

    ctx = jnp.einsum('nlm,nmd->nld', p.astype(compute_dtype), v.astype(compute_dtype),
                     preferred_element_type=jnp.float32)          # (B, L, d) f32

    # ---- accumulate this head's out-projection contribution (full-width, unmasked stores) -
    contrib = jnp.dot(ctx.reshape(rows, d).astype(compute_dtype), wo_ref[...][0],
                      preferred_element_type=jnp.float32)         # (rows, E) f32

    @pl.when(h == 0)
    def _():
        out_ref[...] = jnp.zeros_like(out_ref)

    out_ref[...] += contrib.reshape(B, L, E)

    # ---- last head: add out-proj bias, (dropout = identity), gate, LayerNorm, store -------
    @pl.when(h == pl.num_programs(1) - 1)
    def _():
        attn = out_ref[...].reshape(rows, E) + bo_ref[...]
        y = x.reshape(rows, E) * attn                             # inputs * attn_output
        mu = jnp.mean(y, axis=-1, keepdims=True)
        var = jnp.mean((y - mu) ** 2, axis=-1, keepdims=True)
        out = (y - mu) * jax.lax.rsqrt(var + _LN_EPS) * lnw_ref[...] + lnb_ref[...]
        out_ref[...] = out.reshape(B, L, E)


def _pick_batch_tile(n_batch, seq_len, target_rows=512):
    """Largest divisor of n_batch whose row count (tile*seq) stays near the MXU-friendly target."""
    best = 1
    for cand in range(1, n_batch + 1):
        if n_batch % cand == 0 and cand * seq_len <= target_rows:
            best = cand
    return best


def transformer_block(x, params, num_heads, *, compute_dtype=jnp.bfloat16,
                      batch_tile=None, target_rows=512):
    """x: (L, N, E) like the PyTorch module (seq, batch, embed)."""
    L, N, E = x.shape
    H = num_heads
    assert E % H == 0
    d = E // H
    scale = 1.0 / (d ** 0.5)

    if batch_tile is None:
        batch_tile = _pick_batch_tile(N, L, target_rows)
    assert N % batch_tile == 0

    # ---- one-time parameter packing (in a real model this would be pre-packed) -------------
    w_in, b_in = params["w_in"], params["b_in"]               # (3E, E), (3E,)
    wq, wk, wv = w_in[:E] * scale, w_in[E:2 * E], w_in[2 * E:]  # fold 1/sqrt(d) into Q
    bq, bk, bv = b_in[:E] * scale, b_in[E:2 * E], b_in[2 * E:]

    def heads_in(w):                                          # (E, E) -> (H, E, d)
        return jnp.transpose(w.reshape(H, d, E), (0, 2, 1))

    wqkv_h = jnp.stack([heads_in(wq), heads_in(wk), heads_in(wv)],
                       axis=1).astype(compute_dtype)          # (H, 3, E, d)
    bqkv_h = jnp.stack([bq.reshape(H, d), bk.reshape(H, d), bv.reshape(H, d)],
                       axis=1).reshape(H, 3, 1, d)            # (H, 3, 1, d) f32
    wo_h = jnp.transpose(params["w_out"]).reshape(H, d, E).astype(compute_dtype)  # (H, d, E)
    bo = params["b_out"].reshape(1, E)
    lnw = params["ln_w"].reshape(1, E)
    lnb = params["ln_b"].reshape(1, E)

    x3 = jnp.transpose(x, (1, 0, 2))                          # (N, L, E), single wrapper pass

    kernel = functools.partial(_transformer_block_kernel, compute_dtype=compute_dtype)
    out3 = pl.pallas_call(
        kernel,
        out_shape=jax.ShapeDtypeStruct((N, L, E), jnp.float32),
        grid=(N // batch_tile, H),
        in_specs=[
            pl.BlockSpec((batch_tile, L, E), lambda b, h: (b, 0, 0)),      # x (resident over heads)
            pl.BlockSpec((1, 3, E, d),       lambda b, h: (h, 0, 0, 0)),   # per-head QKV weights
            pl.BlockSpec((1, 3, 1, d),       lambda b, h: (h, 0, 0, 0)),   # per-head QKV bias
            pl.BlockSpec((1, d, E),          lambda b, h: (h, 0, 0)),      # per-head out-proj rows
            pl.BlockSpec((1, E),             lambda b, h: (0, 0)),         # out-proj bias (resident)
            pl.BlockSpec((1, E),             lambda b, h: (0, 0)),         # LayerNorm weight
            pl.BlockSpec((1, E),             lambda b, h: (0, 0)),         # LayerNorm bias
        ],
        out_specs=pl.BlockSpec((batch_tile, L, E), lambda b, h: (b, 0, 0)),
        compiler_params=pltpu.CompilerParams(
            dimension_semantics=("parallel", "arbitrary"),
            vmem_limit_bytes=48 * 1024 * 1024,   # above default scoped limit, fits every gen
        ),
    )(x3, wqkv_h, bqkv_h, wo_h, bo, lnw, lnb)
    return jnp.transpose(out3, (1, 0, 2))


def init_params(key, embed_dim):
    """Deterministic synthetic parameters with the shapes nn.MultiheadAttention/LayerNorm imply."""
    E = embed_dim
    ks = jax.random.split(key, 6)
    u = lambda k, shape, s: jax.random.uniform(k, shape, jnp.float32, -s, s)
    s_in = (6.0 / (E + 3 * E)) ** 0.5
    s_out = 1.0 / E ** 0.5
    return {
        "w_in": u(ks[0], (3 * E, E), s_in),       # in_proj_weight (3E, E)
        "b_in": u(ks[1], (3 * E,), 0.1),          # in_proj_bias
        "w_out": u(ks[2], (E, E), s_out),         # out_proj.weight
        "b_out": u(ks[3], (E,), 0.1),             # out_proj.bias
        "ln_w": 1.0 + u(ks[4], (E,), 0.1),        # LayerNorm affine
        "ln_b": u(ks[5], (E,), 0.1),
    }


def _reference(x, p, num_heads):
    """Pure-JAX reference with PyTorch MultiheadAttention semantics (eval mode)."""
    L, N, E = x.shape
    H = num_heads
    d = E // H
    qkv = jnp.einsum('lne,fe->lnf', x, p["w_in"]) + p["b_in"]
    q, k, v = jnp.split(qkv, 3, axis=-1)
    q = q * (1.0 / d ** 0.5)

    def to_heads(t):                              # (L, N, E) -> (N, H, L, d)
        return t.reshape(L, N, H, d).transpose(1, 2, 0, 3)

    qh, kh, vh = to_heads(q), to_heads(k), to_heads(v)
    s = jnp.einsum('nhld,nhmd->nhlm', qh, kh)
    a = jax.nn.softmax(s, axis=-1)
    ctx = jnp.einsum('nhlm,nhmd->nhld', a, vh)
    ctx = ctx.transpose(2, 0, 1, 3).reshape(L, N, E)
    attn_out = jnp.einsum('lne,oe->lno', ctx, p["w_out"]) + p["b_out"]
    y = x * attn_out                              # dropout is identity at eval
    mu = jnp.mean(y, axis=-1, keepdims=True)
    var = jnp.mean((y - mu) ** 2, axis=-1, keepdims=True)
    return (y - mu) / jnp.sqrt(var + _LN_EPS) * p["ln_w"] + p["ln_b"]


if __name__ == "__main__":
    L, N, E, H = 8, 2, 32, 4                      # seq=8, batch=2, embed_dim=32, num_heads=4
    key = jax.random.PRNGKey(0)
    kx, kp = jax.random.split(key)
    x = jax.random.normal(kx, (L, N, E), jnp.float32)
    params = init_params(kp, E)
    y_ref = _reference(x, params, H)

    # f32 matmul path: tight check against the f32 reference.
    y32 = transformer_block(x, params, num_heads=H, compute_dtype=jnp.float32)
    jax.block_until_ready(y32)
    assert y32.shape == (L, N, E)
    assert bool(jnp.all(jnp.isfinite(y32)))
    assert bool(jnp.allclose(y32, y_ref, rtol=3e-3, atol=3e-3))

    # bf16 matmul path (default, MXU-peak): looser tolerance for operand rounding.
    ybf = transformer_block(x, params, num_heads=H)
    jax.block_until_ready(ybf)
    assert ybf.shape == (L, N, E)
    assert bool(jnp.all(jnp.isfinite(ybf)))
    assert bool(jnp.allclose(ybf, y_ref, rtol=5e-2, atol=5e-2))

    print("KERNEL_OK")
</pallas_src>

<mosaic_0001>
module attributes {stable_mosaic.version = 11 : i64} {
  func.func @_transformer_block_kernel(%arg0: i32, %arg1: i32, %arg2: memref<2x8x32xf32, #tpu.memory_space<vmem>>, %arg3: memref<1x3x32x8xf32, #tpu.memory_space<vmem>>, %arg4: memref<1x3x1x8xf32, #tpu.memory_space<vmem>>, %arg5: memref<1x8x32xf32, #tpu.memory_space<vmem>>, %arg6: memref<1x32xf32, #tpu.memory_space<vmem>>, %arg7: memref<1x32xf32, #tpu.memory_space<vmem>>, %arg8: memref<1x32xf32, #tpu.memory_space<vmem>>, %arg9: memref<2x8x32xf32, #tpu.memory_space<vmem>>) attributes {dimension_semantics = [#tpu.dimension_semantics<parallel>, #tpu.dimension_semantics<arbitrary>], iteration_bounds = array<i64: 1, 4>, scalar_prefetch = 0 : i64, scratch_operands = 0 : i64, tpu.core_type = #tpu.core_type<tc>, window_params = [{transform_indices = @transform_0, window_bounds = array<i64: 2, 8, 32>}, {transform_indices = @transform_1, window_bounds = array<i64: 1, 3, 32, 8>}, {transform_indices = @transform_2, window_bounds = array<i64: 1, 3, 1, 8>}, {transform_indices = @transform_3, window_bounds = array<i64: 1, 8, 32>}, {pipeline_mode = #tpu.pipeline_mode<synchronous>, transform_indices = @transform_4, window_bounds = array<i64: 1, 32>}, {pipeline_mode = #tpu.pipeline_mode<synchronous>, transform_indices = @transform_5, window_bounds = array<i64: 1, 32>}, {pipeline_mode = #tpu.pipeline_mode<synchronous>, transform_indices = @transform_6, window_bounds = array<i64: 1, 32>}, {transform_indices = @transform_7, window_bounds = array<i64: 2, 8, 32>}]} {
    %c0 = arith.constant 0 : index
    %c0_0 = arith.constant 0 : index
    %c0_1 = arith.constant 0 : index
    %0 = vector.load %arg2[%c0, %c0_0, %c0_1] : memref<2x8x32xf32, #tpu.memory_space<vmem>>, vector<2x8x32xf32>
    %1 = vector.shape_cast %0 : vector<2x8x32xf32> to vector<16x32xf32>
    %c0_2 = arith.constant 0 : index
    %c0_3 = arith.constant 0 : index
    %c0_4 = arith.constant 0 : index
    %c0_5 = arith.constant 0 : index
    %2 = vector.load %arg3[%c0_2, %c0_3, %c0_4, %c0_5] : memref<1x3x32x8xf32, #tpu.memory_space<vmem>>, vector<1x3x32x8xf32>
    %c0_6 = arith.constant 0 : index
    %c0_7 = arith.constant 0 : index
    %c0_8 = arith.constant 0 : index
    %c0_9 = arith.constant 0 : index
    %3 = vector.load %arg4[%c0_6, %c0_7, %c0_8, %c0_9] : memref<1x3x1x8xf32, #tpu.memory_space<vmem>>, vector<1x3x1x8xf32>
    %4 = vector.extract_strided_slice %2 {offsets = [0, 0, 0, 0], sizes = [1, 1, 32, 8], strides = [1, 1, 1, 1]} : vector<1x3x32x8xf32> to vector<1x1x32x8xf32>
    %5 = vector.shape_cast %4 : vector<1x1x32x8xf32> to vector<32x8xf32>
    %cst = arith.constant dense<0.000000e+00> : vector<16x8xf32>
    %6 = tpu.matmul %1, %5, %cst {dimension_numbers = #tpu.dot_dimension_numbers<[1], [0], [0], [1], [0, 0, 1, 1], [], []>} : vector<16x32xf32>, vector<32x8xf32>, vector<16x8xf32> -> vector<16x8xf32>
    %7 = vector.extract_strided_slice %3 {offsets = [0, 0, 0, 0], sizes = [1, 1, 1, 8], strides = [1, 1, 1, 1]} : vector<1x3x1x8xf32> to vector<1x1x1x8xf32>
    %8 = vector.shape_cast %7 : vector<1x1x1x8xf32> to vector<1x8xf32>
    %9 = vector.broadcast %8 : vector<1x8xf32> to vector<16x8xf32>
    %10 = arith.addf %6, %9 : vector<16x8xf32>
    %11 = vector.shape_cast %10 : vector<16x8xf32> to vector<2x8x8xf32>
    %12 = vector.extract_strided_slice %2 {offsets = [0, 1, 0, 0], sizes = [1, 1, 32, 8], strides = [1, 1, 1, 1]} : vector<1x3x32x8xf32> to vector<1x1x32x8xf32>
    %13 = vector.shape_cast %12 : vector<1x1x32x8xf32> to vector<32x8xf32>
    %cst_10 = arith.constant dense<0.000000e+00> : vector<16x8xf32>
    %14 = tpu.matmul %1, %13, %cst_10 {dimension_numbers = #tpu.dot_dimension_numbers<[1], [0], [0], [1], [0, 0, 1, 1], [], []>} : vector<16x32xf32>, vector<32x8xf32>, vector<16x8xf32> -> vector<16x8xf32>
    %15 = vector.extract_strided_slice %3 {offsets = [0, 1, 0, 0], sizes = [1, 1, 1, 8], strides = [1, 1, 1, 1]} : vector<1x3x1x8xf32> to vector<1x1x1x8xf32>
    %16 = vector.shape_cast %15 : vector<1x1x1x8xf32> to vector<1x8xf32>
    %17 = vector.broadcast %16 : vector<1x8xf32> to vector<16x8xf32>
    %18 = arith.addf %14, %17 : vector<16x8xf32>
    %19 = vector.shape_cast %18 : vector<16x8xf32> to vector<2x8x8xf32>
    %20 = vector.extract_strided_slice %2 {offsets = [0, 2, 0, 0], sizes = [1, 1, 32, 8], strides = [1, 1, 1, 1]} : vector<1x3x32x8xf32> to vector<1x1x32x8xf32>
    %21 = vector.shape_cast %20 : vector<1x1x32x8xf32> to vector<32x8xf32>
    %cst_11 = arith.constant dense<0.000000e+00> : vector<16x8xf32>
    %22 = tpu.matmul %1, %21, %cst_11 {dimension_numbers = #tpu.dot_dimension_numbers<[1], [0], [0], [1], [0, 0, 1, 1], [], []>} : vector<16x32xf32>, vector<32x8xf32>, vector<16x8xf32> -> vector<16x8xf32>
    %23 = vector.extract_strided_slice %3 {offsets = [0, 2, 0, 0], sizes = [1, 1, 1, 8], strides = [1, 1, 1, 1]} : vector<1x3x1x8xf32> to vector<1x1x1x8xf32>
    %24 = vector.shape_cast %23 : vector<1x1x1x8xf32> to vector<1x8xf32>
    %25 = vector.broadcast %24 : vector<1x8xf32> to vector<16x8xf32>
    %26 = arith.addf %22, %25 : vector<16x8xf32>
    %27 = vector.shape_cast %26 : vector<16x8xf32> to vector<2x8x8xf32>
    "tpu.trace_start"() <{level = 10 : i32, message = "nld,nmd->nlm"}> : () -> ()
    %cst_12 = arith.constant dense<0.000000e+00> : vector<2x8x8xf32>
    %28 = tpu.matmul %11, %19, %cst_12 {dimension_numbers = #tpu.dot_dimension_numbers<[2], [2], [1], [1], [0, 0, 0, 1, 1, 1], [0], [0]>} : vector<2x8x8xf32>, vector<2x8x8xf32>, vector<2x8x8xf32> -> vector<2x8x8xf32>
    "tpu.trace_stop"() : () -> ()
    %cst_13 = arith.constant dense<0xFF800000> : vector<2x8xf32>
    %29 = vector.multi_reduction <maximumf>, %28, %cst_13 [2] : vector<2x8x8xf32> to vector<2x8xf32>
    %30 = vector.shape_cast %29 : vector<2x8xf32> to vector<2x8x1xf32>
    %31 = vector.broadcast %30 : vector<2x8x1xf32> to vector<2x8x8xf32>
    %32 = arith.subf %28, %31 : vector<2x8x8xf32>
    %33 = math.exp %32 : vector<2x8x8xf32>
    %cst_14 = arith.constant dense<0.000000e+00> : vector<2x8xf32>
    %34 = vector.multi_reduction <add>, %33, %cst_14 [2] : vector<2x8x8xf32> to vector<2x8xf32>
    %35 = vector.shape_cast %34 : vector<2x8xf32> to vector<2x8x1xf32>
    %36 = tpu.reciprocal %35 {approx = true} : vector<2x8x1xf32> -> vector<2x8x1xf32>
    %37 = arith.mulf %35, %36 : vector<2x8x1xf32>
    %cst_15 = arith.constant 2.000000e+00 : f32
    %38 = vector.broadcast %cst_15 : f32 to vector<2x8x1xf32>
    %39 = arith.subf %38, %37 : vector<2x8x1xf32>
    %40 = arith.mulf %36, %39 : vector<2x8x1xf32>
    %41 = vector.broadcast %40 : vector<2x8x1xf32> to vector<2x8x8xf32>
    %42 = arith.mulf %33, %41 : vector<2x8x8xf32>
    "tpu.trace_start"() <{level = 10 : i32, message = "nlm,nmd->nld"}> : () -> ()
    %cst_16 = arith.constant dense<0.000000e+00> : vector<2x8x8xf32>
    %43 = tpu.matmul %42, %27, %cst_16 {dimension_numbers = #tpu.dot_dimension_numbers<[2], [1], [1], [2], [0, 0, 0, 1, 1, 2], [0], [0]>} : vector<2x8x8xf32>, vector<2x8x8xf32>, vector<2x8x8xf32> -> vector<2x8x8xf32>
    "tpu.trace_stop"() : () -> ()
    %44 = vector.shape_cast %43 : vector<2x8x8xf32> to vector<16x8xf32>
    %c0_17 = arith.constant 0 : index
    %c0_18 = arith.constant 0 : index
    %c0_19 = arith.constant 0 : index
    %45 = vector.load %arg5[%c0_17, %c0_18, %c0_19] : memref<1x8x32xf32, #tpu.memory_space<vmem>>, vector<1x8x32xf32>
    %46 = vector.shape_cast %45 : vector<1x8x32xf32> to vector<8x32xf32>
    %cst_20 = arith.constant dense<0.000000e+00> : vector<16x32xf32>
    %47 = tpu.matmul %44, %46, %cst_20 {dimension_numbers = #tpu.dot_dimension_numbers<[1], [0], [0], [1], [0, 0, 1, 1], [], []>} : vector<16x8xf32>, vector<8x32xf32>, vector<16x32xf32> -> vector<16x32xf32>
    %c0_i32 = arith.constant 0 : i32
    %48 = arith.cmpi eq, %arg1, %c0_i32 : i32
    %49 = arith.extui %48 : i1 to i32
    %c0_i32_21 = arith.constant 0 : i32
    %50 = arith.cmpi ne, %49, %c0_i32_21 : i32
    scf.if %50 {
      %cst_29 = arith.constant 0.000000e+00 : f32
      %58 = vector.broadcast %cst_29 : f32 to vector<2x8x32xf32>
      %c0_30 = arith.constant 0 : index
      %c0_31 = arith.constant 0 : index
      %c0_32 = arith.constant 0 : index
      %59 = vector.load %arg9[%c0_30, %c0_31, %c0_32] : memref<2x8x32xf32, #tpu.memory_space<vmem>>, vector<2x8x32xf32>
      tpu.vector_store %arg9[%c0_30, %c0_31, %c0_32], %58 {strides = array<i32>} : memref<2x8x32xf32, #tpu.memory_space<vmem>>, vector<2x8x32xf32>,
    } else {
    }
    %c0_22 = arith.constant 0 : index
    %c0_23 = arith.constant 0 : index
    %c0_24 = arith.constant 0 : index
    %51 = vector.load %arg9[%c0_22, %c0_23, %c0_24] : memref<2x8x32xf32, #tpu.memory_space<vmem>>, vector<2x8x32xf32>
    %52 = vector.shape_cast %47 : vector<16x32xf32> to vector<2x8x32xf32>
    %53 = arith.addf %51, %52 : vector<2x8x32xf32>
    %c0_25 = arith.constant 0 : index
    %c0_26 = arith.constant 0 : index
    %c0_27 = arith.constant 0 : index
    %54 = vector.load %arg9[%c0_25, %c0_26, %c0_27] : memref<2x8x32xf32, #tpu.memory_space<vmem>>, vector<2x8x32xf32>
    tpu.vector_store %arg9[%c0_25, %c0_26, %c0_27], %53 {strides = array<i32>} : memref<2x8x32xf32, #tpu.memory_space<vmem>>, vector<2x8x32xf32>,
    %c3_i32 = arith.constant 3 : i32
    %55 = arith.cmpi eq, %arg1, %c3_i32 : i32
    %56 = arith.extui %55 : i1 to i32
    %c0_i32_28 = arith.constant 0 : i32
    %57 = arith.cmpi ne, %56, %c0_i32_28 : i32
    scf.if %57 {
      %c0_29 = arith.constant 0 : index
      %c0_30 = arith.constant 0 : index
      %c0_31 = arith.constant 0 : index
      %58 = vector.load %arg9[%c0_29, %c0_30, %c0_31] : memref<2x8x32xf32, #tpu.memory_space<vmem>>, vector<2x8x32xf32>
      %59 = vector.shape_cast %58 : vector<2x8x32xf32> to vector<16x32xf32>
      %c0_32 = arith.constant 0 : index
      %c0_33 = arith.constant 0 : index
      %60 = vector.load %arg6[%c0_32, %c0_33] : memref<1x32xf32, #tpu.memory_space<vmem>>, vector<1x32xf32>
      %61 = vector.broadcast %60 : vector<1x32xf32> to vector<16x32xf32>
      %62 = arith.addf %59, %61 : vector<16x32xf32>
      %63 = vector.shape_cast %0 : vector<2x8x32xf32> to vector<16x32xf32>
      %64 = arith.mulf %63, %62 : vector<16x32xf32>
      %cst_34 = arith.constant dense<0.000000e+00> : vector<16xf32>
      %65 = vector.multi_reduction <add>, %64, %cst_34 [1] : vector<16x32xf32> to vector<16xf32>
      %66 = vector.shape_cast %65 : vector<16xf32> to vector<16x1xf32>
      %cst_35 = arith.constant 3.200000e+01 : f32
      %67 = vector.broadcast %cst_35 : f32 to vector<16x1xf32>
      %68 = arith.divf %66, %67 : vector<16x1xf32>
      %69 = vector.broadcast %68 : vector<16x1xf32> to vector<16x32xf32>
      %70 = arith.subf %64, %69 : vector<16x32xf32>
      %71 = arith.mulf %70, %70 : vector<16x32xf32>
      %cst_36 = arith.constant dense<0.000000e+00> : vector<16xf32>
      %72 = vector.multi_reduction <add>, %71, %cst_36 [1] : vector<16x32xf32> to vector<16xf32>
      %73 = vector.shape_cast %72 : vector<16xf32> to vector<16x1xf32>
      %cst_37 = arith.constant 3.200000e+01 : f32
      %74 = vector.broadcast %cst_37 : f32 to vector<16x1xf32>
      %75 = arith.divf %73, %74 : vector<16x1xf32>
      %76 = vector.broadcast %68 : vector<16x1xf32> to vector<16x32xf32>
      %77 = arith.subf %64, %76 : vector<16x32xf32>
      %cst_38 = arith.constant 9.99999974E-6 : f32
      %78 = vector.broadcast %cst_38 : f32 to vector<16x1xf32>
      %79 = arith.addf %75, %78 : vector<16x1xf32>
      %80 = math.rsqrt %79 : vector<16x1xf32>
      %81 = vector.broadcast %80 : vector<16x1xf32> to vector<16x32xf32>
      %82 = arith.mulf %77, %81 : vector<16x32xf32>
      %c0_39 = arith.constant 0 : index
      %c0_40 = arith.constant 0 : index
      %83 = vector.load %arg7[%c0_39, %c0_40] : memref<1x32xf32, #tpu.memory_space<vmem>>, vector<1x32xf32>
      %84 = vector.broadcast %83 : vector<1x32xf32> to vector<16x32xf32>
      %85 = arith.mulf %82, %84 : vector<16x32xf32>
      %c0_41 = arith.constant 0 : index
      %c0_42 = arith.constant 0 : index
      %86 = vector.load %arg8[%c0_41, %c0_42] : memref<1x32xf32, #tpu.memory_space<vmem>>, vector<1x32xf32>
      %87 = vector.broadcast %86 : vector<1x32xf32> to vector<16x32xf32>
      %88 = arith.addf %85, %87 : vector<16x32xf32>
      %89 = vector.shape_cast %88 : vector<16x32xf32> to vector<2x8x32xf32>
      %c0_43 = arith.constant 0 : index
      %c0_44 = arith.constant 0 : index
      %c0_45 = arith.constant 0 : index
      %90 = vector.load %arg9[%c0_43, %c0_44, %c0_45] : memref<2x8x32xf32, #tpu.memory_space<vmem>>, vector<2x8x32xf32>
      tpu.vector_store %arg9[%c0_43, %c0_44, %c0_45], %89 {strides = array<i32>} : memref<2x8x32xf32, #tpu.memory_space<vmem>>, vector<2x8x32xf32>,
    } else {
    }
    return
  }
  func.func @transform_0(%arg0: i32, %arg1: i32) -> (i32, i32, i32) {
    %c0_i32 = arith.constant 0 : i32
    %c0_i32_0 = arith.constant 0 : i32
    %c0_i32_1 = arith.constant 0 : i32
    return %arg0, %c0_i32, %c0_i32_0 : i32, i32, i32
  }
  func.func @transform_1(%arg0: i32, %arg1: i32) -> (i32, i32, i32, i32) {
    %c0_i32 = arith.constant 0 : i32
    %c0_i32_0 = arith.constant 0 : i32
    %c0_i32_1 = arith.constant 0 : i32
    %c0_i32_2 = arith.constant 0 : i32
    return %arg1, %c0_i32, %c0_i32_0, %c0_i32_1 : i32, i32, i32, i32
  }
  func.func @transform_2(%arg0: i32, %arg1: i32) -> (i32, i32, i32, i32) {
    %c0_i32 = arith.constant 0 : i32
    %c0_i32_0 = arith.constant 0 : i32
    %c0_i32_1 = arith.constant 0 : i32
    %c0_i32_2 = arith.constant 0 : i32
    return %arg1, %c0_i32, %c0_i32_0, %c0_i32_1 : i32, i32, i32, i32
  }
  func.func @transform_3(%arg0: i32, %arg1: i32) -> (i32, i32, i32) {
    %c0_i32 = arith.constant 0 : i32
    %c0_i32_0 = arith.constant 0 : i32
    %c0_i32_1 = arith.constant 0 : i32
    return %arg1, %c0_i32, %c0_i32_0 : i32, i32, i32
  }
  func.func @transform_4(%arg0: i32, %arg1: i32) -> (i32, i32) {
    %c0_i32 = arith.constant 0 : i32
    %c0_i32_0 = arith.constant 0 : i32
    %c0_i32_1 = arith.constant 0 : i32
    return %c0_i32, %c0_i32_0 : i32, i32
  }
  func.func @transform_5(%arg0: i32, %arg1: i32) -> (i32, i32) {
    %c0_i32 = arith.constant 0 : i32
    %c0_i32_0 = arith.constant 0 : i32
    %c0_i32_1 = arith.constant 0 : i32
    return %c0_i32, %c0_i32_0 : i32, i32
  }
  func.func @transform_6(%arg0: i32, %arg1: i32) -> (i32, i32) {
    %c0_i32 = arith.constant 0 : i32
    %c0_i32_0 = arith.constant 0 : i32
    %c0_i32_1 = arith.constant 0 : i32
    return %c0_i32, %c0_i32_0 : i32, i32
  }
  func.func @transform_7(%arg0: i32, %arg1: i32) -> (i32, i32, i32) {
    %c0_i32 = arith.constant 0 : i32
    %c0_i32_0 = arith.constant 0 : i32
    %c0_i32_1 = arith.constant 0 : i32
    return %arg0, %c0_i32, %c0_i32_0 : i32, i32, i32
  }
}

</mosaic_0001>

<llo_original>
// kernel: tpu_custom_call.1
$region0: #{tpu_custom_call.1}
  #allocation0 [shape = 'u32[]', space=smem, size = 0x4, offset = 0x4, fixed_abs, tag = 'smem constant byte address 0x4 - core index']
  #allocation1 [shape = 'u32[144,128]{1,0:T(1,128)}', space=vmem, size = 0x12000, scoped, tag = 'internal scratch']
  %s0 = inlined_call_operand.vmem [shape: f32[2,8,32], index: 0, kind: input, shape index: {}]
  %s1 = inlined_call_operand.vmem [shape: f32[4,3,32,8], index: 1, kind: input, shape index: {}]
  %s2 = inlined_call_operand.vmem [shape: f32[4,3,1,8], index: 2, kind: input, shape index: {}]
  %s3 = inlined_call_operand.vmem [shape: f32[4,8,32], index: 3, kind: input, shape index: {}]
  %s4 = inlined_call_operand.vmem [shape: f32[1,32], index: 4, kind: input, shape index: {}]
  %s5 = inlined_call_operand.vmem [shape: f32[1,32], index: 5, kind: input, shape index: {}]
  %s6 = inlined_call_operand.vmem [shape: f32[1,32], index: 6, kind: input, shape index: {}]
  %s7 = inlined_call_operand.hbm [shape: f32[2,8,32], index: 7, kind: output, shape index: {}]
  %s8 = sld [smem:[#allocation0]]
  $region69: #{tpu_custom_call.1} parent=0
    _
  %s10 = ssub.s32 1, %s8
  %s11 = scalar_select 0, %s10, %s8
  $region1: #{tpu_custom_call.1} parent=0
    #allocation2 [shape = 'u8[8192]{0}', space=vmem, size = 0x2000, scoped, tag = 'output window, operand 0, single buffered']
    #allocation3 [shape = 's32[2]{0}', space=sflag, size = 0x8, scoped, tag = 'scoped memory for tpu_custom_call.1']
    %12 = vsyncpa [#allocation3], 0
    loop: start=0, step=1, limit=6
    $region2: #{tpu_custom_call.1} parent=1 // loop_pre_header
      _
    $region3: #{tpu_custom_call.1} parent=1 // loop_header
      %s14 = sphi 0, %s18
      %p15 = scmp.ge.s32.totalorder %s14, 6
      %s21 = sphi 0, %s33
      %s22 = sphi 0, %s29
      %s23 = sphi 0, %s21
      %s24 = sphi 0, %s22
      %s25 = sphi 0, %s23
      %s26 = sphi 0, %s24
      %s36 = sphi 0, %s38
      %s39 = sphi 0, %s36
      %s40 = sphi 0, %s39
      %s56 = sphi 0, %s40
      %s62 = sphi 0, %s64
      %s65 = sphi 0, %s62
      %s66 = sphi 0, %s65
      %s82 = sphi 0, %s66
      %s88 = sphi 0, %s90
      %s91 = sphi 0, %s88
      %s92 = sphi 0, %s91
      %s108 = sphi 0, %s92
      %s114 = sphi 0, %s116
      %s117 = sphi 0, %s114
      %s118 = sphi 0, %s117
      %s134 = sphi 0, %s118
      %s138 = sphi 0, %s138
      %s140 = sphi 0, %s138
      %s141 = sphi 0, %s140
      %s155 = sphi 0, %s141
      %s159 = sphi 0, %s159
      %s161 = sphi 0, %s159
      %s162 = sphi 0, %s161
      %s176 = sphi 0, %s162
      %s180 = sphi 0, %s180
      %s182 = sphi 0, %s180
      %s183 = sphi 0, %s182
      %s197 = sphi 0, %s183
      %s203 = sphi 0, %s205
      %s206 = sphi 0, %s203
      %s207 = sphi 0, %s206
      %s223 = sphi 0, %s207
    $region4: #{tpu_custom_call.1} parent=1 // loop_header_branch
      %17 = sbr.rel (%p15) target = $region8
    $region5: #{tpu_custom_call.1} parent=1 // loop_body
      %s19 = ssub.s32 %s14, 1
      %s20 = ssub.s32 %s14, 2
      %s27 = sadd.s32 1, %s22
      %p28 = scmp.ge.s32.totalorder %s27, 4
      %s29 = scalar_select %p28, 0, %s27
      %s30 = sadd.s32 1, %s21
      %s31 = scalar_select %p28, %s30, %s21
      %p32 = scmp.ge.s32.totalorder %s31, 1
      %s33 = scalar_select %p32, 0, %s31
      %s34 = ssub.s32 %s21, %s33
      %p35 = scmp.eq.s32.totalorder %s34, 0
      %s37 = sadd.s32 %s36, 1
      %s38 = scalar_select %p35, %s36, %s37
      %p41 = pneg %p35
      %p42 = scmp.eq.s32.totalorder %s14, 3
      %p43 = por %p41, %p42
      %p44 = scmp.ne.s32.totalorder %s36, %s39
      %p45 = scmp.eq.s32.totalorder %s14, 0
      %p46 = por %p44, %p45
      %p47 = scmp.ne.s32.totalorder %s36, %s39
      %p48 = scmp.eq.s32.totalorder %s19, 3
      %p49 = por %p47, %p48
      %p50 = scmp.ne.s32.totalorder %s39, %s40
      %p51 = scmp.eq.s32.totalorder %s19, 0
      %p52 = por %p50, %p51
      %p53 = scmp.ne.s32.totalorder %s39, %s40
      %p54 = scmp.eq.s32.totalorder %s20, 3
      %p55 = por %p53, %p54
      %p57 = scmp.ne.s32.totalorder %s40, %s56
      %p58 = scmp.eq.s32.totalorder %s20, 0
      %p59 = por %p57, %p58
      %s60 = ssub.s32 %s22, %s29
      %p61 = scmp.eq.s32.totalorder %s60, 0
      %s63 = sadd.s32 %s62, 1
      %s64 = scalar_select %p61, %s62, %s63
      %p67 = pneg %p61
      %p68 = scmp.eq.s32.totalorder %s14, 3
      %p69 = por %p67, %p68
      %p70 = scmp.ne.s32.totalorder %s62, %s65
      %p71 = scmp.eq.s32.totalorder %s14, 0
      %p72 = por %p70, %p71
      %p73 = scmp.ne.s32.totalorder %s62, %s65
      %p74 = scmp.eq.s32.totalorder %s19, 3
      %p75 = por %p73, %p74
      %p76 = scmp.ne.s32.totalorder %s65, %s66
      %p77 = scmp.eq.s32.totalorder %s19, 0
      %p78 = por %p76, %p77
      %p79 = scmp.ne.s32.totalorder %s65, %s66
      %p80 = scmp.eq.s32.totalorder %s20, 3
      %p81 = por %p79, %p80
      %p83 = scmp.ne.s32.totalorder %s66, %s82
      %p84 = scmp.eq.s32.totalorder %s20, 0
      %p85 = por %p83, %p84
      %s86 = ssub.s32 %s22, %s29
      %p87 = scmp.eq.s32.totalorder %s86, 0
      %s89 = sadd.s32 %s88, 1
      %s90 = scalar_select %p87, %s88, %s89
      %p93 = pneg %p87
      %p94 = scmp.eq.s32.totalorder %s14, 3
      %p95 = por %p93, %p94
      %p96 = scmp.ne.s32.totalorder %s88, %s91
      %p97 = scmp.eq.s32.totalorder %s14, 0
      %p98 = por %p96, %p97
      %p99 = scmp.ne.s32.totalorder %s88, %s91
      %p100 = scmp.eq.s32.totalorder %s19, 3
      %p101 = por %p99, %p100
      %p102 = scmp.ne.s32.totalorder %s91, %s92
      %p103 = scmp.eq.s32.totalorder %s19, 0
      %p104 = por %p102, %p103
      %p105 = scmp.ne.s32.totalorder %s91, %s92
      %p106 = scmp.eq.s32.totalorder %s20, 3
      %p107 = por %p105, %p106
      %p109 = scmp.ne.s32.totalorder %s92, %s108
      %p110 = scmp.eq.s32.totalorder %s20, 0
      %p111 = por %p109, %p110
      %s112 = ssub.s32 %s22, %s29
      %p113 = scmp.eq.s32.totalorder %s112, 0
      %s115 = sadd.s32 %s114, 1
      %s116 = scalar_select %p113, %s114, %s115
      %p119 = pneg %p113
      %p120 = scmp.eq.s32.totalorder %s14, 3
      %p121 = por %p119, %p120
      %p122 = scmp.ne.s32.totalorder %s114, %s117
      %p123 = scmp.eq.s32.totalorder %s14, 0
      %p124 = por %p122, %p123
      %p125 = scmp.ne.s32.totalorder %s114, %s117
      %p126 = scmp.eq.s32.totalorder %s19, 3
      %p127 = por %p125, %p126
      %p128 = scmp.ne.s32.totalorder %s117, %s118
      %p129 = scmp.eq.s32.totalorder %s19, 0
      %p130 = por %p128, %p129
      %p131 = scmp.ne.s32.totalorder %s117, %s118
      %p132 = scmp.eq.s32.totalorder %s20, 3
      %p133 = por %p131, %p132
      %p135 = scmp.ne.s32.totalorder %s118, %s134
      %p136 = scmp.eq.s32.totalorder %s20, 0
      %p137 = por %p135, %p136
      %s139 = sadd.s32 %s138, 1
      %p142 = scmp.eq.s32.totalorder %s14, 3
      %p143 = scmp.ne.s32.totalorder %s138, %s140
      %p144 = scmp.eq.s32.totalorder %s14, 0
      %p145 = por %p143, %p144
      %p146 = scmp.ne.s32.totalorder %s138, %s140
      %p147 = scmp.eq.s32.totalorder %s19, 3
      %p148 = por %p146, %p147
      %p149 = scmp.ne.s32.totalorder %s140, %s141
      %p150 = scmp.eq.s32.totalorder %s19, 0
      %p151 = por %p149, %p150
      %p152 = scmp.ne.s32.totalorder %s140, %s141
      %p153 = scmp.eq.s32.totalorder %s20, 3
      %p154 = por %p152, %p153
      %p156 = scmp.ne.s32.totalorder %s141, %s155
      %p157 = scmp.eq.s32.totalorder %s20, 0
      %p158 = por %p156, %p157
      %s160 = sadd.s32 %s159, 1
      %p163 = scmp.eq.s32.totalorder %s14, 3
      %p164 = scmp.ne.s32.totalorder %s159, %s161
      %p165 = scmp.eq.s32.totalorder %s14, 0
      %p166 = por %p164, %p165
      %p167 = scmp.ne.s32.totalorder %s159, %s161
      %p168 = scmp.eq.s32.totalorder %s19, 3
      %p169 = por %p167, %p168
      %p170 = scmp.ne.s32.totalorder %s161, %s162
      %p171 = scmp.eq.s32.totalorder %s19, 0
      %p172 = por %p170, %p171
      %p173 = scmp.ne.s32.totalorder %s161, %s162
      %p174 = scmp.eq.s32.totalorder %s20, 3
      %p175 = por %p173, %p174
      %p177 = scmp.ne.s32.totalorder %s162, %s176
      %p178 = scmp.eq.s32.totalorder %s20, 0
      %p179 = por %p177, %p178
      %s181 = sadd.s32 %s180, 1
      %p184 = scmp.eq.s32.totalorder %s14, 3
      %p185 = scmp.ne.s32.totalorder %s180, %s182
      %p186 = scmp.eq.s32.totalorder %s14, 0
      %p187 = por %p185, %p186
      %p188 = scmp.ne.s32.totalorder %s180, %s182
      %p189 = scmp.eq.s32.totalorder %s19, 3
      %p190 = por %p188, %p189
      %p191 = scmp.ne.s32.totalorder %s182, %s183
      %p192 = scmp.eq.s32.totalorder %s19, 0
      %p193 = por %p191, %p192
      %p194 = scmp.ne.s32.totalorder %s182, %s183
      %p195 = scmp.eq.s32.totalorder %s20, 3
      %p196 = por %p194, %p195
      %p198 = scmp.ne.s32.totalorder %s183, %s197
      %p199 = scmp.eq.s32.totalorder %s20, 0
      %p200 = por %p198, %p199
      %s201 = ssub.s32 %s21, %s33
      %p202 = scmp.eq.s32.totalorder %s201, 0
      %s204 = sadd.s32 %s203, 1
      %s205 = scalar_select %p202, %s203, %s204
      %p208 = pneg %p202
      %p209 = scmp.eq.s32.totalorder %s14, 3
      %p210 = por %p208, %p209
      %p211 = scmp.ne.s32.totalorder %s203, %s206
      %p212 = scmp.eq.s32.totalorder %s14, 0
      %p213 = por %p211, %p212
      %p214 = scmp.ne.s32.totalorder %s203, %s206
      %p215 = scmp.eq.s32.totalorder %s19, 3
      %p216 = por %p214, %p215
      %p217 = scmp.ne.s32.totalorder %s206, %s207
      %p218 = scmp.eq.s32.totalorder %s19, 0
      %p219 = por %p217, %p218
      %p220 = scmp.ne.s32.totalorder %s206, %s207
      %p221 = scmp.eq.s32.totalorder %s20, 3
      %p222 = por %p220, %p221
      %p224 = scmp.ne.s32.totalorder %s207, %s223
      %p225 = scmp.eq.s32.totalorder %s20, 0
      %p226 = por %p224, %p225
      %p227 = scmp.le.s32.totalorder 1, %s14
      %p228 = scmp.lt.s32.totalorder %s14, 5
      %p229 = pnand %p227, %p228
      %p230 = pneg %p229
      // Predicated region
      $region9: #{tpu_custom_call.1} parent=5 // pred_check
        _
      $region10: #{tpu_custom_call.1} parent=5 // pred_check_branch
        %232 = sbr.rel (%p229) target = $region12
      $region11: #{tpu_custom_call.1} parent=5 // pred_region
        %s233 = ssub.s32 %s14, 1
        // Predicated region
        $region13: #{tpu_custom_call.1} parent=11 // pred_check
          %p234 = pneg %p52
        $region14: #{tpu_custom_call.1} parent=11 // pred_check_branch
          %236 = sbr.rel (%p234) target = $region16
        $region15: #{tpu_custom_call.1} parent=11 // pred_region
          %s237 = smul.u32 2, %s23
          %p238 = scmp.lt.s32.totalorder %s237, 1
          %s239 = scalar_select %p238, %s237, 1
          %s240 = smul.addr %s239, 8
          %s241 = scalar_lea.vmem %s0, %s240
          %s242 = smul.u32 2, %s23
        $region16: #{tpu_custom_call.1} parent=11 // pred_fallthru
          _
        // Predicated region
        $region17: #{tpu_custom_call.1} parent=11 // pred_check
          %p243 = pneg %p151
        $region18: #{tpu_custom_call.1} parent=11 // pred_check_branch
          %245 = sbr.rel (%p243) target = $region20
        $region19: #{tpu_custom_call.1} parent=11 // pred_region
          _
        $region20: #{tpu_custom_call.1} parent=11 // pred_fallthru
          _
        // Predicated region
        $region21: #{tpu_custom_call.1} parent=11 // pred_check
          %p246 = pneg %p172
        $region22: #{tpu_custom_call.1} parent=11 // pred_check_branch
          %248 = sbr.rel (%p246) target = $region24
        $region23: #{tpu_custom_call.1} parent=11 // pred_region
          _
        $region24: #{tpu_custom_call.1} parent=11 // pred_fallthru
          _
        // Predicated region
        $region25: #{tpu_custom_call.1} parent=11 // pred_check
          %p249 = pneg %p193
        $region26: #{tpu_custom_call.1} parent=11 // pred_check_branch
          %251 = sbr.rel (%p249) target = $region28
        $region27: #{tpu_custom_call.1} parent=11 // pred_region
          _
        $region28: #{tpu_custom_call.1} parent=11 // pred_fallthru
          _
      $region12: #{tpu_custom_call.1} parent=5 // pred_fallthru
        _
      %p252 = scmp.lt.s32.totalorder %s14, 4
      // Predicated region
      $region29: #{tpu_custom_call.1} parent=5 // pred_check
        %p253 = pneg %p252
      $region30: #{tpu_custom_call.1} parent=5 // pred_check_branch
        %255 = sbr.rel (%p253) target = $region32
      $region31: #{tpu_custom_call.1} parent=5 // pred_region
        // Predicated region
        $region33: #{tpu_custom_call.1} parent=31 // pred_check
          %p256 = pneg %p72
        $region34: #{tpu_custom_call.1} parent=31 // pred_check_branch
          %258 = sbr.rel (%p256) target = $region36
        $region35: #{tpu_custom_call.1} parent=31 // pred_region
          %p259 = scmp.lt.s32.totalorder %s22, 3
          %s260 = scalar_select %p259, %s22, 3
          %s261 = smul.addr %s260, 12
          %s262 = smul.addr %s261, 8
          %s263 = scalar_lea.vmem %s1, %s262
        $region36: #{tpu_custom_call.1} parent=31 // pred_fallthru
          _
        // Predicated region
        $region37: #{tpu_custom_call.1} parent=31 // pred_check
          %p264 = pneg %p98
        $region38: #{tpu_custom_call.1} parent=31 // pred_check_branch
          %266 = sbr.rel (%p264) target = $region40
        $region39: #{tpu_custom_call.1} parent=31 // pred_region
          %p267 = scmp.lt.s32.totalorder %s22, 3
          %s268 = scalar_select %p267, %s22, 3
          %s269 = smul.addr %s268, 3
          %s270 = scalar_lea.vmem %s2, %s269
        $region40: #{tpu_custom_call.1} parent=31 // pred_fallthru
          _
        // Predicated region
        $region41: #{tpu_custom_call.1} parent=31 // pred_check
          %p271 = pneg %p124
        $region42: #{tpu_custom_call.1} parent=31 // pred_check_branch
          %273 = sbr.rel (%p271) target = $region44
        $region43: #{tpu_custom_call.1} parent=31 // pred_region
          %p274 = scmp.lt.s32.totalorder %s22, 3
          %s275 = scalar_select %p274, %s22, 3
          %s276 = smul.addr %s275, 8
          %s277 = scalar_lea.vmem %s3, %s276
        $region44: #{tpu_custom_call.1} parent=31 // pred_fallthru
          _
      $region32: #{tpu_custom_call.1} parent=5 // pred_fallthru
        _
      %p278 = scmp.le.s32.totalorder 1, %s14
      %p279 = scmp.lt.s32.totalorder %s14, 5
      %p280 = pnand %p278, %p279
      %p281 = pneg %p280
      // Predicated region
      $region45: #{tpu_custom_call.1} parent=5 // pred_check
        _
      $region46: #{tpu_custom_call.1} parent=5 // pred_check_branch
        %283 = sbr.rel (%p280) target = $region48
      $region47: #{tpu_custom_call.1} parent=5 // pred_region
        %s284 = ssub.s32 %s14, 1
        %s285 = smul.u32 2, %s23
        %p286 = scmp.lt.s32.totalorder %s285, 1
        %s287 = scalar_select %p286, %s285, 1
        %s288 = smul.addr %s287, 8
        %s289 = scalar_lea.vmem %s0, %s288
        %p290 = pneg %p52
        %p291 = pneg %p49
        %p292 = scmp.lt.s32.totalorder %s24, 3
        %s293 = scalar_select %p292, %s24, 3
        %s294 = smul.addr %s293, 12
        %s295 = smul.addr %s294, 8
        %s296 = scalar_lea.vmem %s1, %s295
        %p297 = pneg %p78
        %p298 = pneg %p75
        %p299 = scmp.lt.s32.totalorder %s24, 3
        %s300 = scalar_select %p299, %s24, 3
        %s301 = smul.addr %s300, 3
        %s302 = scalar_lea.vmem %s2, %s301
        %p303 = pneg %p104
        %p304 = pneg %p101
        %p305 = scmp.lt.s32.totalorder %s24, 3
        %s306 = scalar_select %p305, %s24, 3
        %s307 = smul.addr %s306, 8
        %s308 = scalar_lea.vmem %s3, %s307
        %p309 = pneg %p130
        %p310 = pneg %p127
        %p311 = pneg %p151
        %p312 = pneg %p148
        %p313 = pneg %p172
        %p314 = pneg %p169
        %p315 = pneg %p193
        %p316 = pneg %p190
        %p317 = pneg %p219
        %p318 = pneg %p216
        %s319 = smul.u32 2, %s23
        %p320 = scmp.lt.s32.totalorder %s319, 1
        %s321 = scalar_select %p320, %s319, 1
        %s322 = smul.addr %s321, 8
        %s323 = scalar_lea.vmem %s0, %s322
        %s324 = smul.u32 2, %s23
        %p325 = scmp.lt.s32.totalorder %s24, 3
        %s326 = scalar_select %p325, %s24, 3
        %s327 = smul.addr %s326, 12
        %s328 = smul.addr %s327, 8
        %s329 = scalar_lea.vmem %s1, %s328
        %p330 = scmp.lt.s32.totalorder %s24, 3
        %s331 = scalar_select %p330, %s24, 3
        %s332 = smul.addr %s331, 3
        %s333 = scalar_lea.vmem %s2, %s332
        %p334 = scmp.lt.s32.totalorder %s24, 3
        %s335 = scalar_select %p334, %s24, 3
        %s336 = smul.addr %s335, 8
        %s337 = scalar_lea.vmem %s3, %s336
        %s338 = smul.u32 2, %s23
        %v339 = vld [vmem:[%s323] sm:$0xff]
        %v340 = vld [vmem:[%s323 + $0x8] sm:$0xff]
        %v341 = vld [vmem:[%s329] sm:$0xff]
        %v342 = vld [vmem:[%s329 + $0x8] sm:$0xff]
        %v343 = vld [vmem:[%s329 + $0x10] sm:$0xff]
        %v344 = vld [vmem:[%s329 + $0x18] sm:$0xff]
        %v345 = vld [vmem:[%s329 + $0x20] sm:$0xff]
        %v346 = vld [vmem:[%s329 + $0x28] sm:$0xff]
        %v347 = vld [vmem:[%s329 + $0x30] sm:$0xff]
        %v348 = vld [vmem:[%s329 + $0x38] sm:$0xff]
        %v349 = vld [vmem:[%s329 + $0x40] sm:$0xff]
        %v350 = vld [vmem:[%s329 + $0x48] sm:$0xff]
        %v351 = vld [vmem:[%s329 + $0x50] sm:$0xff]
        %v352 = vld [vmem:[%s329 + $0x58] sm:$0xff]
        %v353 = vld [vmem:[%s333] sm:$0x1]
        %v354 = vld [vmem:[%s333 + $0x1] sm:$0x1]
        %v355 = vld [vmem:[%s333 + $0x2] sm:$0x1]
        %v357 = vlaneseq
        %v358 = vshrl.u32 %v357, 7
        %v359 = vsub.s32 0, %v358
        %v360 = vrot.slane %v353, %v359
        %vm362 = vcmask 261120
        %v364 = vsel %vm362, %v339, 0
        %v367 = vsel %vm362, %v340, 0
        %369 = vmatprep.subr.mxu0 0.0
        %370 = vmatpush1.msra.mxu0 %v341
        %371 = vmatprep.subr.mxu0 0.0
        %372 = vmatpush1.msra.mxu0 %v342
        %373 = vmatprep.subr.mxu0 0.0
        %374 = vmatpush1.msra.mxu0 %v343
        %375 = vmatprep.subr.mxu0 0.0
        %376 = vmatpush1.msra.mxu0 %v344
        %377 = vmatprep.subr.mxu0 0.0
        %378 = vmatpush1.msra.mxu0 0.0
        %379 = vmatprep.subr.mxu0 0.0
        %380 = vmatpush1.msra.mxu0 0.0
        %381 = vmatprep.subr.mxu0 0.0
        %382 = vmatpush1.msra.mxu0 0.0
        %383 = vmatprep.subr.mxu0 0.0
        %384 = vmatpush1.msra.mxu0 0.0
        %385 = vmatprep.subr.mxu0 0.0
        %386 = vmatpush1.msra.mxu0 0.0
        %387 = vmatprep.subr.mxu0 0.0
        %388 = vmatpush1.msra.mxu0 0.0
        %389 = vmatprep.subr.mxu0 0.0
        %390 = vmatpush1.msra.mxu0 0.0
        %391 = vmatprep.subr.mxu0 0.0
        %392 = vmatpush1.msra.mxu0 0.0
        %393 = vmatprep.subr.mxu0 0.0
        %394 = vmatpush1.msra.mxu0 0.0
        %395 = vmatprep.subr.mxu0 0.0
        %396 = vmatpush1.msra.mxu0 0.0
        %397 = vmatprep.subr.mxu0 0.0
        %398 = vmatpush1.msra.mxu0 0.0
        %399 = vmatprep.subr.mxu0 0.0
        %400 = vmatpush1.msra.mxu0 0.0
        %401 = vmatprep.subr.mxu0 0.0
        %402 = vmatpush1.msra.mxu0 0.0
        %403 = vmatprep.subr.mxu0 0.0
        %404 = vmatpush1.msra.mxu0 0.0
        %405 = vmatprep.subr.mxu0 0.0
        %406 = vmatpush1.msra.mxu0 0.0
        %407 = vmatprep.subr.mxu0 0.0
        %408 = vmatpush1.msra.mxu0 0.0
        %409 = vmatprep.subr.mxu0 0.0
        %410 = vmatpush1.msra.mxu0 0.0
        %411 = vmatprep.subr.mxu0 0.0
        %412 = vmatpush1.msra.mxu0 0.0
        %413 = vmatprep.subr.mxu0 0.0
        %414 = vmatpush1.msra.mxu0 0.0
        %415 = vmatprep.subr.mxu0 0.0
        %416 = vmatpush1.msra.mxu0 0.0
        %417 = vmatprep.subr.mxu0 0.0
        %418 = vmatpush1.msra.mxu0 0.0
        %419 = vmatprep.subr.mxu0 0.0
        %420 = vmatpush1.msra.mxu0 0.0
        %421 = vmatprep.subr.mxu0 0.0
        %422 = vmatpush1.msra.mxu0 0.0
        %423 = vmatprep.subr.mxu0 0.0
        %424 = vmatpush1.msra.mxu0 0.0
        %425 = vmatprep.subr.mxu0 0.0
        %426 = vmatpush1.msra.mxu0 0.0
        %427 = vmatprep.subr.mxu0 0.0
        %428 = vmatpush1.msra.mxu0 0.0
        %429 = vmatprep.subr.mxu0 0.0
        %430 = vmatpush1.msra.mxu0 0.0
        %431 = vmatprep.subr.mxu0 0.0
        %432 = vmatpush1.msra.mxu0 0.0
        %433 = vmatprep.mubr.f32.mxu0 0.0
        %434 = vmatmul.mubr.f32.gmra.mrb[0].mxu0 %v364
        %v435 = vpop.f32.mrb[0].mxu0
        %v436 = vadd.f32 %v360, %v435
        %v437 = vpop.f32.mrb[0].mxu0
        %438 = vmatprep.mubr.f32.mxu0 0.0
        %439 = vmatmul.mubr.f32.gmra.mrb[0].mxu0 %v367
        %v440 = vpop.f32.mrb[0].mxu0
        %v441 = vadd.f32 %v360, %v440
        %v442 = vpop.f32.mrb[0].mxu0
        %443 = vdwg.mxu0
        %v445 = vlaneseq
        %v446 = vshrl.u32 %v445, 7
        %v447 = vsub.s32 0, %v446
        %v448 = vrot.slane %v354, %v447
        %450 = vmatprep.subr.mxu0 0.0
        %451 = vmatpush1.msra.mxu0 %v345
        %452 = vmatprep.subr.mxu0 0.0
        %453 = vmatpush1.msra.mxu0 %v346
        %454 = vmatprep.subr.mxu0 0.0
        %455 = vmatpush1.msra.mxu0 %v347
        %456 = vmatprep.subr.mxu0 0.0
        %457 = vmatpush1.msra.mxu0 %v348
        %458 = vmatprep.subr.mxu0 0.0
        %459 = vmatpush1.msra.mxu0 0.0
        %460 = vmatprep.subr.mxu0 0.0
        %461 = vmatpush1.msra.mxu0 0.0
        %462 = vmatprep.subr.mxu0 0.0
        %463 = vmatpush1.msra.mxu0 0.0
        %464 = vmatprep.subr.mxu0 0.0
        %465 = vmatpush1.msra.mxu0 0.0
        %466 = vmatprep.subr.mxu0 0.0
        %467 = vmatpush1.msra.mxu0 0.0
        %468 = vmatprep.subr.mxu0 0.0
        %469 = vmatpush1.msra.mxu0 0.0
        %470 = vmatprep.subr.mxu0 0.0
        %471 = vmatpush1.msra.mxu0 0.0
        %472 = vmatprep.subr.mxu0 0.0
        %473 = vmatpush1.msra.mxu0 0.0
        %474 = vmatprep.subr.mxu0 0.0
        %475 = vmatpush1.msra.mxu0 0.0
        %476 = vmatprep.subr.mxu0 0.0
        %477 = vmatpush1.msra.mxu0 0.0
        %478 = vmatprep.subr.mxu0 0.0
        %479 = vmatpush1.msra.mxu0 0.0
        %480 = vmatprep.subr.mxu0 0.0
        %481 = vmatpush1.msra.mxu0 0.0
        %482 = vmatprep.subr.mxu0 0.0
        %483 = vmatpush1.msra.mxu0 0.0
        %484 = vmatprep.subr.mxu0 0.0
        %485 = vmatpush1.msra.mxu0 0.0
        %486 = vmatprep.subr.mxu0 0.0
        %487 = vmatpush1.msra.mxu0 0.0
        %488 = vmatprep.subr.mxu0 0.0
        %489 = vmatpush1.msra.mxu0 0.0
        %490 = vmatprep.subr.mxu0 0.0
        %491 = vmatpush1.msra.mxu0 0.0
        %492 = vmatprep.subr.mxu0 0.0
        %493 = vmatpush1.msra.mxu0 0.0
        %494 = vmatprep.subr.mxu0 0.0
        %495 = vmatpush1.msra.mxu0 0.0
        %496 = vmatprep.subr.mxu0 0.0
        %497 = vmatpush1.msra.mxu0 0.0
        %498 = vmatprep.subr.mxu0 0.0
        %499 = vmatpush1.msra.mxu0 0.0
        %500 = vmatprep.subr.mxu0 0.0
        %501 = vmatpush1.msra.mxu0 0.0
        %502 = vmatprep.subr.mxu0 0.0
        %503 = vmatpush1.msra.mxu0 0.0
        %504 = vmatprep.subr.mxu0 0.0
        %505 = vmatpush1.msra.mxu0 0.0
        %506 = vmatprep.subr.mxu0 0.0
        %507 = vmatpush1.msra.mxu0 0.0
        %508 = vmatprep.subr.mxu0 0.0
        %509 = vmatpush1.msra.mxu0 0.0
        %510 = vmatprep.subr.mxu0 0.0
        %511 = vmatpush1.msra.mxu0 0.0
        %512 = vmatprep.subr.mxu0 0.0
        %513 = vmatpush1.msra.mxu0 0.0
        %514 = vmatprep.mubr.f32.mxu0 0.0
        %515 = vmatmul.mubr.f32.gmra.mrb[0].mxu0 %v364
        %v516 = vpop.f32.mrb[0].mxu0
        %v517 = vadd.f32 %v448, %v516
        %v518 = vpop.f32.mrb[0].mxu0
        %519 = vmatprep.mubr.f32.mxu0 0.0
        %520 = vmatmul.mubr.f32.gmra.mrb[0].mxu0 %v367
        %v521 = vpop.f32.mrb[0].mxu0
        %v522 = vadd.f32 %v448, %v521
        %v523 = vpop.f32.mrb[0].mxu0
        %524 = vdwg.mxu0
        %v526 = vlaneseq
        %v527 = vshrl.u32 %v526, 7
        %v528 = vsub.s32 0, %v527
        %v529 = vrot.slane %v355, %v528
        %531 = vmatprep.subr.mxu0 0.0
        %532 = vmatpush1.msra.mxu0 %v349
        %533 = vmatprep.subr.mxu0 0.0
        %534 = vmatpush1.msra.mxu0 %v350
        %535 = vmatprep.subr.mxu0 0.0
        %536 = vmatpush1.msra.mxu0 %v351
        %537 = vmatprep.subr.mxu0 0.0
        %538 = vmatpush1.msra.mxu0 %v352
        %539 = vmatprep.subr.mxu0 0.0
        %540 = vmatpush1.msra.mxu0 0.0
        %541 = vmatprep.subr.mxu0 0.0
        %542 = vmatpush1.msra.mxu0 0.0
        %543 = vmatprep.subr.mxu0 0.0
        %544 = vmatpush1.msra.mxu0 0.0
        %545 = vmatprep.subr.mxu0 0.0
        %546 = vmatpush1.msra.mxu0 0.0
        %547 = vmatprep.subr.mxu0 0.0
        %548 = vmatpush1.msra.mxu0 0.0
        %549 = vmatprep.subr.mxu0 0.0
        %550 = vmatpush1.msra.mxu0 0.0
        %551 = vmatprep.subr.mxu0 0.0
        %552 = vmatpush1.msra.mxu0 0.0
        %553 = vmatprep.subr.mxu0 0.0
        %554 = vmatpush1.msra.mxu0 0.0
        %555 = vmatprep.subr.mxu0 0.0
        %556 = vmatpush1.msra.mxu0 0.0
        %557 = vmatprep.subr.mxu0 0.0
        %558 = vmatpush1.msra.mxu0 0.0
        %559 = vmatprep.subr.mxu0 0.0
        %560 = vmatpush1.msra.mxu0 0.0
        %561 = vmatprep.subr.mxu0 0.0
        %562 = vmatpush1.msra.mxu0 0.0
        %563 = vmatprep.subr.mxu0 0.0
        %564 = vmatpush1.msra.mxu0 0.0
        %565 = vmatprep.subr.mxu0 0.0
        %566 = vmatpush1.msra.mxu0 0.0
        %567 = vmatprep.subr.mxu0 0.0
        %568 = vmatpush1.msra.mxu0 0.0
        %569 = vmatprep.subr.mxu0 0.0
        %570 = vmatpush1.msra.mxu0 0.0
        %571 = vmatprep.subr.mxu0 0.0
        %572 = vmatpush1.msra.mxu0 0.0
        %573 = vmatprep.subr.mxu0 0.0
        %574 = vmatpush1.msra.mxu0 0.0
        %575 = vmatprep.subr.mxu0 0.0
        %576 = vmatpush1.msra.mxu0 0.0
        %577 = vmatprep.subr.mxu0 0.0
        %578 = vmatpush1.msra.mxu0 0.0
        %579 = vmatprep.subr.mxu0 0.0
        %580 = vmatpush1.msra.mxu0 0.0
        %581 = vmatprep.subr.mxu0 0.0
        %582 = vmatpush1.msra.mxu0 0.0
        %583 = vmatprep.subr.mxu0 0.0
        %584 = vmatpush1.msra.mxu0 0.0
        %585 = vmatprep.subr.mxu0 0.0
        %586 = vmatpush1.msra.mxu0 0.0
        %587 = vmatprep.subr.mxu0 0.0
        %588 = vmatpush1.msra.mxu0 0.0
        %589 = vmatprep.subr.mxu0 0.0
        %590 = vmatpush1.msra.mxu0 0.0
        %591 = vmatprep.subr.mxu0 0.0
        %592 = vmatpush1.msra.mxu0 0.0
        %593 = vmatprep.subr.mxu0 0.0
        %594 = vmatpush1.msra.mxu0 0.0
        %595 = vmatprep.mubr.f32.mxu0 0.0
        %596 = vmatmul.mubr.f32.gmra.mrb[0].mxu0 %v364
        %v597 = vpop.f32.mrb[0].mxu0
        %v598 = vadd.f32 %v529, %v597
        %v599 = vpop.f32.mrb[0].mxu0
        %600 = vmatprep.mubr.f32.mxu0 0.0
        %601 = vmatmul.mubr.f32.gmra.mrb[0].mxu0 %v367
        %v602 = vpop.f32.mrb[0].mxu0
        %v603 = vadd.f32 %v529, %v602
        %v604 = vpop.f32.mrb[0].mxu0
        %605 = vdwg.mxu0
        %vm606 = vcmask 64512
        %v608 = vsel %vm606, %v436, 0
        %v611 = vsel %vm606, %v517, 0
        %613 = vmatprep.subr.mxu0 0.0
        %614 = vmatpush1.xpose.msra.mxu0 %v611
        %615 = vmatprep.subr.mxu0 0.0
        %616 = vmatpush1.xpose.msra.mxu0 0.0
        %617 = vmatprep.subr.mxu0 0.0
        %618 = vmatpush1.xpose.msra.mxu0 0.0
        %619 = vmatprep.subr.mxu0 0.0
        %620 = vmatpush1.xpose.msra.mxu0 0.0
        %621 = vmatprep.subr.mxu0 0.0
        %622 = vmatpush1.xpose.msra.mxu0 0.0
        %623 = vmatprep.subr.mxu0 0.0
        %624 = vmatpush1.xpose.msra.mxu0 0.0
        %625 = vmatprep.subr.mxu0 0.0
        %626 = vmatpush1.xpose.msra.mxu0 0.0
        %627 = vmatprep.subr.mxu0 0.0
        %628 = vmatpush1.xpose.msra.mxu0 0.0
        %629 = vmatprep.subr.mxu0 0.0
        %630 = vmatpush1.xpose.msra.mxu0 0.0
        %631 = vmatprep.subr.mxu0 0.0
        %632 = vmatpush1.xpose.msra.mxu0 0.0
        %633 = vmatprep.subr.mxu0 0.0
        %634 = vmatpush1.xpose.msra.mxu0 0.0
        %635 = vmatprep.subr.mxu0 0.0
        %636 = vmatpush1.xpose.msra.mxu0 0.0
        %637 = vmatprep.subr.mxu0 0.0
        %638 = vmatpush1.xpose.msra.mxu0 0.0
        %639 = vmatprep.subr.mxu0 0.0
        %640 = vmatpush1.xpose.msra.mxu0 0.0
        %641 = vmatprep.subr.mxu0 0.0
        %642 = vmatpush1.xpose.msra.mxu0 0.0
        %643 = vmatprep.subr.mxu0 0.0
        %644 = vmatpush1.xpose.msra.mxu0 0.0
        %645 = vmatprep.subr.mxu0 0.0
        %646 = vmatpush1.xpose.msra.mxu0 0.0
        %647 = vmatprep.subr.mxu0 0.0
        %648 = vmatpush1.xpose.msra.mxu0 0.0
        %649 = vmatprep.subr.mxu0 0.0
        %650 = vmatpush1.xpose.msra.mxu0 0.0
        %651 = vmatprep.subr.mxu0 0.0
        %652 = vmatpush1.xpose.msra.mxu0 0.0
        %653 = vmatprep.subr.mxu0 0.0
        %654 = vmatpush1.xpose.msra.mxu0 0.0
        %655 = vmatprep.subr.mxu0 0.0
        %656 = vmatpush1.xpose.msra.mxu0 0.0
        %657 = vmatprep.subr.mxu0 0.0
        %658 = vmatpush1.xpose.msra.mxu0 0.0
        %659 = vmatprep.subr.mxu0 0.0
        %660 = vmatpush1.xpose.msra.mxu0 0.0
        %661 = vmatprep.subr.mxu0 0.0
        %662 = vmatpush1.xpose.msra.mxu0 0.0
        %663 = vmatprep.subr.mxu0 0.0
        %664 = vmatpush1.xpose.msra.mxu0 0.0
        %665 = vmatprep.subr.mxu0 0.0
        %666 = vmatpush1.xpose.msra.mxu0 0.0
        %667 = vmatprep.subr.mxu0 0.0
        %668 = vmatpush1.xpose.msra.mxu0 0.0
        %669 = vmatprep.subr.mxu0 0.0
        %670 = vmatpush1.xpose.msra.mxu0 0.0
        %671 = vmatprep.subr.mxu0 0.0
        %672 = vmatpush1.xpose.msra.mxu0 0.0
        %673 = vmatprep.subr.mxu0 0.0
        %674 = vmatpush1.xpose.msra.mxu0 0.0
        %675 = vmatprep.subr.mxu0 0.0
        %676 = vmatpush1.xpose.msra.mxu0 0.0
        %677 = vmatprep.mubr.f32.mxu0 0.0
        %678 = vmatmul.mubr.f32.gmra.mrb[0].mxu0 %v608
        %v679 = vpop.f32.mrb[0].mxu0
        %v680 = vadd.f32 0.0, %v679
        %v681 = vpop.f32.mrb[0].mxu0
        %682 = vdwg.mxu0
        %v684 = vsel %vm606, %v441, 0
        %v687 = vsel %vm606, %v522, 0
        %689 = vmatprep.subr.mxu0 0.0
        %690 = vmatpush1.xpose.msra.mxu0 %v687
        %691 = vmatprep.subr.mxu0 0.0
        %692 = vmatpush1.xpose.msra.mxu0 0.0
        %693 = vmatprep.subr.mxu0 0.0
        %694 = vmatpush1.xpose.msra.mxu0 0.0
        %695 = vmatprep.subr.mxu0 0.0
        %696 = vmatpush1.xpose.msra.mxu0 0.0
        %697 = vmatprep.subr.mxu0 0.0
        %698 = vmatpush1.xpose.msra.mxu0 0.0
        %699 = vmatprep.subr.mxu0 0.0
        %700 = vmatpush1.xpose.msra.mxu0 0.0
        %701 = vmatprep.subr.mxu0 0.0
        %702 = vmatpush1.xpose.msra.mxu0 0.0
        %703 = vmatprep.subr.mxu0 0.0
        %704 = vmatpush1.xpose.msra.mxu0 0.0
        %705 = vmatprep.subr.mxu0 0.0
        %706 = vmatpush1.xpose.msra.mxu0 0.0
        %707 = vmatprep.subr.mxu0 0.0
        %708 = vmatpush1.xpose.msra.mxu0 0.0
        %709 = vmatprep.subr.mxu0 0.0
        %710 = vmatpush1.xpose.msra.mxu0 0.0
        %711 = vmatprep.subr.mxu0 0.0
        %712 = vmatpush1.xpose.msra.mxu0 0.0
        %713 = vmatprep.subr.mxu0 0.0
        %714 = vmatpush1.xpose.msra.mxu0 0.0
        %715 = vmatprep.subr.mxu0 0.0
        %716 = vmatpush1.xpose.msra.mxu0 0.0
        %717 = vmatprep.subr.mxu0 0.0
        %718 = vmatpush1.xpose.msra.mxu0 0.0
        %719 = vmatprep.subr.mxu0 0.0
        %720 = vmatpush1.xpose.msra.mxu0 0.0
        %721 = vmatprep.subr.mxu0 0.0
        %722 = vmatpush1.xpose.msra.mxu0 0.0
        %723 = vmatprep.subr.mxu0 0.0
        %724 = vmatpush1.xpose.msra.mxu0 0.0
        %725 = vmatprep.subr.mxu0 0.0
        %726 = vmatpush1.xpose.msra.mxu0 0.0
        %727 = vmatprep.subr.mxu0 0.0
        %728 = vmatpush1.xpose.msra.mxu0 0.0
        %729 = vmatprep.subr.mxu0 0.0
        %730 = vmatpush1.xpose.msra.mxu0 0.0
        %731 = vmatprep.subr.mxu0 0.0
        %732 = vmatpush1.xpose.msra.mxu0 0.0
        %733 = vmatprep.subr.mxu0 0.0
        %734 = vmatpush1.xpose.msra.mxu0 0.0
        %735 = vmatprep.subr.mxu0 0.0
        %736 = vmatpush1.xpose.msra.mxu0 0.0
        %737 = vmatprep.subr.mxu0 0.0
        %738 = vmatpush1.xpose.msra.mxu0 0.0
        %739 = vmatprep.subr.mxu0 0.0
        %740 = vmatpush1.xpose.msra.mxu0 0.0
        %741 = vmatprep.subr.mxu0 0.0
        %742 = vmatpush1.xpose.msra.mxu0 0.0
        %743 = vmatprep.subr.mxu0 0.0
        %744 = vmatpush1.xpose.msra.mxu0 0.0
        %745 = vmatprep.subr.mxu0 0.0
        %746 = vmatpush1.xpose.msra.mxu0 0.0
        %747 = vmatprep.subr.mxu0 0.0
        %748 = vmatpush1.xpose.msra.mxu0 0.0
        %749 = vmatprep.subr.mxu0 0.0
        %750 = vmatpush1.xpose.msra.mxu0 0.0
        %751 = vmatprep.subr.mxu0 0.0
        %752 = vmatpush1.xpose.msra.mxu0 0.0
        %753 = vmatprep.mubr.f32.mxu0 0.0
        %754 = vmatmul.mubr.f32.gmra.mrb[0].mxu0 %v684
        %v755 = vpop.f32.mrb[0].mxu0
        %v756 = vadd.f32 0.0, %v755
        %v757 = vpop.f32.mrb[0].mxu0
        %758 = vdwg.mxu0
        %v759 = vsel %vm606, %v680, -inf
        %760 = vmax.xlane.f32.xlu0 %v759
        %v761 = vpop.xlane.xlu0 %760
        %v762 = vsel %vm606, %v756, -inf
        %763 = vmax.xlane.f32.xlu0 %v762
        %v764 = vpop.xlane.xlu0 %763
        %v765 = vsub.f32 %v680, %v761
        %v766 = vsub.f32 %v756, %v764
        %v767 = vmul.f32 %v765, 1.442695
        %v768 = vpow.pop %v767
        %v769 = vmul.f32 %v766, 1.442695
        %v770 = vpow.pop %v769
        %v771 = vsel %vm606, %v768, 0.0
        %772 = vadd.xlane.f32.xlu0 %v771
        %v773 = vpop.xlane.xlu0 %772
        %v774 = vsel %vm606, %v770, 0.0
        %775 = vadd.xlane.f32.xlu0 %v774
        %v776 = vpop.xlane.xlu0 %775
        %v777 = vrcp.pop %v773
        %v778 = vrcp.pop %v776
        %v779 = vmul.f32 %v773, %v777
        %v780 = vmul.f32 %v776, %v778
        %v781 = vsub.f32 2.0, %v779
        %v782 = vsub.f32 2.0, %v780
        %v783 = vmul.f32 %v777, %v781
        %v784 = vmul.f32 %v778, %v782
        %v785 = vmul.f32 %v768, %v783
        %v786 = vmul.f32 %v770, %v784
        %v788 = vsel %vm606, %v785, 0
        %790 = vmatprep.subr.mxu0 0.0
        %791 = vmatpush1.msra.mxu0 %v598
        %792 = vmatprep.subr.mxu0 0.0
        %793 = vmatpush1.msra.mxu0 0.0
        %794 = vmatprep.subr.mxu0 0.0
        %795 = vmatpush1.msra.mxu0 0.0
        %796 = vmatprep.subr.mxu0 0.0
        %797 = vmatpush1.msra.mxu0 0.0
        %798 = vmatprep.subr.mxu0 0.0
        %799 = vmatpush1.msra.mxu0 0.0
        %800 = vmatprep.subr.mxu0 0.0
        %801 = vmatpush1.msra.mxu0 0.0
        %802 = vmatprep.subr.mxu0 0.0
        %803 = vmatpush1.msra.mxu0 0.0
        %804 = vmatprep.subr.mxu0 0.0
        %805 = vmatpush1.msra.mxu0 0.0
        %806 = vmatprep.subr.mxu0 0.0
        %807 = vmatpush1.msra.mxu0 0.0
        %808 = vmatprep.subr.mxu0 0.0
        %809 = vmatpush1.msra.mxu0 0.0
        %810 = vmatprep.subr.mxu0 0.0
        %811 = vmatpush1.msra.mxu0 0.0
        %812 = vmatprep.subr.mxu0 0.0
        %813 = vmatpush1.msra.mxu0 0.0
        %814 = vmatprep.subr.mxu0 0.0
        %815 = vmatpush1.msra.mxu0 0.0
        %816 = vmatprep.subr.mxu0 0.0
        %817 = vmatpush1.msra.mxu0 0.0
        %818 = vmatprep.subr.mxu0 0.0
        %819 = vmatpush1.msra.mxu0 0.0
        %820 = vmatprep.subr.mxu0 0.0
        %821 = vmatpush1.msra.mxu0 0.0
        %822 = vmatprep.subr.mxu0 0.0
        %823 = vmatpush1.msra.mxu0 0.0
        %824 = vmatprep.subr.mxu0 0.0
        %825 = vmatpush1.msra.mxu0 0.0
        %826 = vmatprep.subr.mxu0 0.0
        %827 = vmatpush1.msra.mxu0 0.0
        %828 = vmatprep.subr.mxu0 0.0
        %829 = vmatpush1.msra.mxu0 0.0
        %830 = vmatprep.subr.mxu0 0.0
        %831 = vmatpush1.msra.mxu0 0.0
        %832 = vmatprep.subr.mxu0 0.0
        %833 = vmatpush1.msra.mxu0 0.0
        %834 = vmatprep.subr.mxu0 0.0
        %835 = vmatpush1.msra.mxu0 0.0
        %836 = vmatprep.subr.mxu0 0.0
        %837 = vmatpush1.msra.mxu0 0.0
        %838 = vmatprep.subr.mxu0 0.0
        %839 = vmatpush1.msra.mxu0 0.0
        %840 = vmatprep.subr.mxu0 0.0
        %841 = vmatpush1.msra.mxu0 0.0
        %842 = vmatprep.subr.mxu0 0.0
        %843 = vmatpush1.msra.mxu0 0.0
        %844 = vmatprep.subr.mxu0 0.0
        %845 = vmatpush1.msra.mxu0 0.0
        %846 = vmatprep.subr.mxu0 0.0
        %847 = vmatpush1.msra.mxu0 0.0
        %848 = vmatprep.subr.mxu0 0.0
        %849 = vmatpush1.msra.mxu0 0.0
        %850 = vmatprep.subr.mxu0 0.0
        %851 = vmatpush1.msra.mxu0 0.0
        %852 = vmatprep.subr.mxu0 0.0
        %853 = vmatpush1.msra.mxu0 0.0
        %854 = vmatprep.mubr.f32.mxu0 0.0
        %855 = vmatmul.mubr.f32.gmra.mrb[0].mxu0 %v788
        %v856 = vpop.f32.mrb[0].mxu0
        %v857 = vadd.f32 0.0, %v856
        %v858 = vpop.f32.mrb[0].mxu0
        %859 = vdwg.mxu0
        %v861 = vsel %vm606, %v786, 0
        %863 = vmatprep.subr.mxu0 0.0
        %864 = vmatpush1.msra.mxu0 %v603
        %865 = vmatprep.subr.mxu0 0.0
        %866 = vmatpush1.msra.mxu0 0.0
        %867 = vmatprep.subr.mxu0 0.0
        %868 = vmatpush1.msra.mxu0 0.0
        %869 = vmatprep.subr.mxu0 0.0
        %870 = vmatpush1.msra.mxu0 0.0
        %871 = vmatprep.subr.mxu0 0.0
        %872 = vmatpush1.msra.mxu0 0.0
        %873 = vmatprep.subr.mxu0 0.0
        %874 = vmatpush1.msra.mxu0 0.0
        %875 = vmatprep.subr.mxu0 0.0
        %876 = vmatpush1.msra.mxu0 0.0
        %877 = vmatprep.subr.mxu0 0.0
        %878 = vmatpush1.msra.mxu0 0.0
        %879 = vmatprep.subr.mxu0 0.0
        %880 = vmatpush1.msra.mxu0 0.0
        %881 = vmatprep.subr.mxu0 0.0
        %882 = vmatpush1.msra.mxu0 0.0
        %883 = vmatprep.subr.mxu0 0.0
        %884 = vmatpush1.msra.mxu0 0.0
        %885 = vmatprep.subr.mxu0 0.0
        %886 = vmatpush1.msra.mxu0 0.0
        %887 = vmatprep.subr.mxu0 0.0
        %888 = vmatpush1.msra.mxu0 0.0
        %889 = vmatprep.subr.mxu0 0.0
        %890 = vmatpush1.msra.mxu0 0.0
        %891 = vmatprep.subr.mxu0 0.0
        %892 = vmatpush1.msra.mxu0 0.0
        %893 = vmatprep.subr.mxu0 0.0
        %894 = vmatpush1.msra.mxu0 0.0
        %895 = vmatprep.subr.mxu0 0.0
        %896 = vmatpush1.msra.mxu0 0.0
        %897 = vmatprep.subr.mxu0 0.0
        %898 = vmatpush1.msra.mxu0 0.0
        %899 = vmatprep.subr.mxu0 0.0
        %900 = vmatpush1.msra.mxu0 0.0
        %901 = vmatprep.subr.mxu0 0.0
        %902 = vmatpush1.msra.mxu0 0.0
        %903 = vmatprep.subr.mxu0 0.0
        %904 = vmatpush1.msra.mxu0 0.0
        %905 = vmatprep.subr.mxu0 0.0
        %906 = vmatpush1.msra.mxu0 0.0
        %907 = vmatprep.subr.mxu0 0.0
        %908 = vmatpush1.msra.mxu0 0.0
        %909 = vmatprep.subr.mxu0 0.0
        %910 = vmatpush1.msra.mxu0 0.0
        %911 = vmatprep.subr.mxu0 0.0
        %912 = vmatpush1.msra.mxu0 0.0
        %913 = vmatprep.subr.mxu0 0.0
        %914 = vmatpush1.msra.mxu0 0.0
        %915 = vmatprep.subr.mxu0 0.0
        %916 = vmatpush1.msra.mxu0 0.0
        %917 = vmatprep.subr.mxu0 0.0
        %918 = vmatpush1.msra.mxu0 0.0
        %919 = vmatprep.subr.mxu0 0.0
        %920 = vmatpush1.msra.mxu0 0.0
        %921 = vmatprep.subr.mxu0 0.0
        %922 = vmatpush1.msra.mxu0 0.0
        %923 = vmatprep.subr.mxu0 0.0
        %924 = vmatpush1.msra.mxu0 0.0
        %925 = vmatprep.subr.mxu0 0.0
        %926 = vmatpush1.msra.mxu0 0.0
        %927 = vmatprep.mubr.f32.mxu0 0.0
        %928 = vmatmul.mubr.f32.gmra.mrb[0].mxu0 %v861
        %v929 = vpop.f32.mrb[0].mxu0
        %v930 = vadd.f32 0.0, %v929
        %v931 = vpop.f32.mrb[0].mxu0
        %932 = vdwg.mxu0
        %v933 = vld [vmem:[%s337] sm:$0xff]
        %v935 = vsel %vm606, %v857, 0
        %v938 = vsel %vm606, %v930, 0
        %940 = vmatprep.subr.mxu0 0.0
        %941 = vmatpush1.msra.mxu0 %v933
        %942 = vmatprep.subr.mxu0 0.0
        %943 = vmatpush1.msra.mxu0 0.0
        %944 = vmatprep.subr.mxu0 0.0
        %945 = vmatpush1.msra.mxu0 0.0
        %946 = vmatprep.subr.mxu0 0.0
        %947 = vmatpush1.msra.mxu0 0.0
        %948 = vmatprep.subr.mxu0 0.0
        %949 = vmatpush1.msra.mxu0 0.0
        %950 = vmatprep.subr.mxu0 0.0
        %951 = vmatpush1.msra.mxu0 0.0
        %952 = vmatprep.subr.mxu0 0.0
        %953 = vmatpush1.msra.mxu0 0.0
        %954 = vmatprep.subr.mxu0 0.0
        %955 = vmatpush1.msra.mxu0 0.0
        %956 = vmatprep.subr.mxu0 0.0
        %957 = vmatpush1.msra.mxu0 0.0
        %958 = vmatprep.subr.mxu0 0.0
        %959 = vmatpush1.msra.mxu0 0.0
        %960 = vmatprep.subr.mxu0 0.0
        %961 = vmatpush1.msra.mxu0 0.0
        %962 = vmatprep.subr.mxu0 0.0
        %963 = vmatpush1.msra.mxu0 0.0
        %964 = vmatprep.subr.mxu0 0.0
        %965 = vmatpush1.msra.mxu0 0.0
        %966 = vmatprep.subr.mxu0 0.0
        %967 = vmatpush1.msra.mxu0 0.0
        %968 = vmatprep.subr.mxu0 0.0
        %969 = vmatpush1.msra.mxu0 0.0
        %970 = vmatprep.subr.mxu0 0.0
        %971 = vmatpush1.msra.mxu0 0.0
        %972 = vmatprep.subr.mxu0 0.0
        %973 = vmatpush1.msra.mxu0 0.0
        %974 = vmatprep.subr.mxu0 0.0
        %975 = vmatpush1.msra.mxu0 0.0
        %976 = vmatprep.subr.mxu0 0.0
        %977 = vmatpush1.msra.mxu0 0.0
        %978 = vmatprep.subr.mxu0 0.0
        %979 = vmatpush1.msra.mxu0 0.0
        %980 = vmatprep.subr.mxu0 0.0
        %981 = vmatpush1.msra.mxu0 0.0
        %982 = vmatprep.subr.mxu0 0.0
        %983 = vmatpush1.msra.mxu0 0.0
        %984 = vmatprep.subr.mxu0 0.0
        %985 = vmatpush1.msra.mxu0 0.0
        %986 = vmatprep.subr.mxu0 0.0
        %987 = vmatpush1.msra.mxu0 0.0
        %988 = vmatprep.subr.mxu0 0.0
        %989 = vmatpush1.msra.mxu0 0.0
        %990 = vmatprep.subr.mxu0 0.0
        %991 = vmatpush1.msra.mxu0 0.0
        %992 = vmatprep.subr.mxu0 0.0
        %993 = vmatpush1.msra.mxu0 0.0
        %994 = vmatprep.subr.mxu0 0.0
        %995 = vmatpush1.msra.mxu0 0.0
        %996 = vmatprep.subr.mxu0 0.0
        %997 = vmatpush1.msra.mxu0 0.0
        %998 = vmatprep.subr.mxu0 0.0
        %999 = vmatpush1.msra.mxu0 0.0
        %1000 = vmatprep.subr.mxu0 0.0
        %1001 = vmatpush1.msra.mxu0 0.0
        %1002 = vmatprep.subr.mxu0 0.0
        %1003 = vmatpush1.msra.mxu0 0.0
        %1004 = vmatprep.mubr.f32.mxu0 0.0
        %1005 = vmatmul.mubr.f32.gmra.mrb[0].mxu0 %v935
        %v1006 = vpop.f32.mrb[0].mxu0
        %v1007 = vadd.f32 0.0, %v1006
        %v1008 = vpop.f32.mrb[0].mxu0
        %1009 = vmatprep.mubr.f32.mxu0 0.0
        %1010 = vmatmul.mubr.f32.gmra.mrb[0].mxu0 %v938
        %v1011 = vpop.f32.mrb[0].mxu0
        %v1012 = vadd.f32 0.0, %v1011
        %v1013 = vpop.f32.mrb[0].mxu0
        %1014 = vdwg.mxu0
        %p1015 = scmp.eq.s32.totalorder %s24, 0
        // Predicated region
        $region49: #{tpu_custom_call.1} parent=47 // pred_check
          %p1016 = pneg %p1015
        $region50: #{tpu_custom_call.1} parent=47 // pred_check_branch
          %1018 = sbr.rel (%p1016) target = $region52
        $region51: #{tpu_custom_call.1} parent=47 // pred_region
          %1019 = vst.msk [vmem:[#allocation2] sm:$0xff] %vm362, 0.0
          %1020 = vst.msk [vmem:[#allocation2 + $0x8] sm:$0xff] %vm362, 0.0
        $region52: #{tpu_custom_call.1} parent=47 // pred_fallthru
          _
        %v1021 = vld [vmem:[#allocation2] sm:$0xff]
        %v1022 = vld [vmem:[#allocation2 + $0x8] sm:$0xff]
        %v1023 = vadd.f32 %v1021, %v1007
        %v1024 = vadd.f32 %v1022, %v1012
        %1025 = vst.msk [vmem:[#allocation2] sm:$0xff] %vm362, %v1023
        %1026 = vst.msk [vmem:[#allocation2 + $0x8] sm:$0xff] %vm362, %v1024
        %p1027 = scmp.eq.s32.totalorder %s24, 3
        // Predicated region
        $region53: #{tpu_custom_call.1} parent=47 // pred_check
          %p1028 = pneg %p1027
        $region54: #{tpu_custom_call.1} parent=47 // pred_check_branch
          %1030 = sbr.rel (%p1028) target = $region56
        $region55: #{tpu_custom_call.1} parent=47 // pred_region
          %v1031 = vld [vmem:[#allocation2] sm:$0xff]
          %v1032 = vld [vmem:[#allocation2 + $0x8] sm:$0xff]
          %v1033 = vld [vmem:[%s4] sm:$0x1]
          %v1035 = vlaneseq
          %v1036 = vshrl.u32 %v1035, 7
          %v1037 = vsub.s32 0, %v1036
          %v1038 = vrot.slane %v1033, %v1037
          %v1040 = vadd.f32 %v1031, %v1038
          %v1041 = vadd.f32 %v1032, %v1038
          %v1042 = vmul.f32 %v339, %v1040
          %v1043 = vmul.f32 %v340, %v1041
          %v1044 = vsel %vm362, %v1042, 0.0
          %1045 = vadd.xlane.f32.xlu0 %v1044
          %v1046 = vpop.xlane.xlu0 %1045
          %v1047 = vsel %vm362, %v1043, 0.0
          %1048 = vadd.xlane.f32.xlu0 %v1047
          %v1049 = vpop.xlane.xlu0 %1048
          %v1050 = vrcp.pop 32.0
          %v1051 = vmul.f32 %v1046, %v1050
          %v1052 = vmul.f32 %v1049, %v1050
          %v1053 = vsub.f32 %v1042, %v1051
          %v1054 = vsub.f32 %v1043, %v1052
          %v1055 = vmul.f32 %v1053, %v1053
          %v1056 = vmul.f32 %v1054, %v1054
          %v1057 = vsel %vm362, %v1055, 0.0
          %1058 = vadd.xlane.f32.xlu0 %v1057
          %v1059 = vpop.xlane.xlu0 %1058
          %v1060 = vsel %vm362, %v1056, 0.0
          %1061 = vadd.xlane.f32.xlu0 %v1060
          %v1062 = vpop.xlane.xlu0 %1061
          %v1063 = vmul.f32 %v1059, %v1050
          %v1064 = vmul.f32 %v1062, %v1050
          %v1065 = vadd.f32 %v1063, 1e-05
          %v1066 = vadd.f32 %v1064, 1e-05
          %v1067 = vrsqrt.pop %v1065
          %v1068 = vrsqrt.pop %v1066
          %v1069 = vmul.f32 %v1053, %v1067
          %v1070 = vmul.f32 %v1054, %v1068
          %v1071 = vld [vmem:[%s5] sm:$0x1]
          %v1073 = vlaneseq
          %v1074 = vshrl.u32 %v1073, 7
          %v1075 = vsub.s32 0, %v1074
          %v1076 = vrot.slane %v1071, %v1075
          %v1078 = vmul.f32 %v1069, %v1076
          %v1079 = vmul.f32 %v1070, %v1076
          %v1080 = vld [vmem:[%s6] sm:$0x1]
          %v1082 = vlaneseq
          %v1083 = vshrl.u32 %v1082, 7
          %v1084 = vsub.s32 0, %v1083
          %v1085 = vrot.slane %v1080, %v1084
          %v1087 = vadd.f32 %v1078, %v1085
          %v1088 = vadd.f32 %v1079, %v1085
          %1089 = vst.msk [vmem:[#allocation2] sm:$0xff] %vm362, %v1087
          %1090 = vst.msk [vmem:[#allocation2 + $0x8] sm:$0xff] %vm362, %v1088
        $region56: #{tpu_custom_call.1} parent=47 // pred_fallthru
          _
        // Predicated region
        $region57: #{tpu_custom_call.1} parent=47 // pred_check
          %p1091 = pneg %p216
        $region58: #{tpu_custom_call.1} parent=47 // pred_check_branch
          %1093 = sbr.rel (%p1091) target = $region60
        $region59: #{tpu_custom_call.1} parent=47 // pred_region
          %s1094 = smul.u32 2, %s23
          %s1096 = ssub.s32 256, 256
          %1097 = vsyncadd [#allocation3], %s1096
          %s1098 = smul.addr %s1094, 128
          %s1099 = scalar_lea.hbm %s7, %s1098
          %s1100 = sshll.u32 [#allocation2], 4
          %s1101 = int_to_ptr.vmem [resolvable:$true] %s1100
          %1106 = dma.vmem_to_hbm [thread:$0]  %s1101, 256, %s1099, [#allocation3], 128, 128, 8
        $region60: #{tpu_custom_call.1} parent=47 // pred_fallthru
          _
        // Predicated region
        $region61: #{tpu_custom_call.1} parent=47 // pred_check
          %p1107 = pneg %p216
        $region62: #{tpu_custom_call.1} parent=47 // pred_check_branch
          %1109 = sbr.rel (%p1107) target = $region64
        $region63: #{tpu_custom_call.1} parent=47 // pred_region
          %1110 = dma.done [#allocation3], 256
        $region64: #{tpu_custom_call.1} parent=47 // pred_fallthru
          _
      $region48: #{tpu_custom_call.1} parent=5 // pred_fallthru
        _
      %p1111 = scmp.le.s32.totalorder 2, %s14
      // Predicated region
      $region65: #{tpu_custom_call.1} parent=5 // pred_check
        %p1112 = pneg %p1111
      $region66: #{tpu_custom_call.1} parent=5 // pred_check_branch
        %1114 = sbr.rel (%p1112) target = $region68
      $region67: #{tpu_custom_call.1} parent=5 // pred_region
        %s1115 = ssub.s32 %s14, 2
      $region68: #{tpu_custom_call.1} parent=5 // pred_fallthru
        _
    $region6: #{tpu_custom_call.1} parent=1 // loop_footer
      %s18 = sadd.s32 1, %s14
    $region7: #{tpu_custom_call.1} parent=1 // loop_footer_branch
      %13 = sbr.rel target = $region3
    $region8: #{tpu_custom_call.1} parent=1 // loop_exit
      _
    %1116 = vsyncpa [#allocation3], 1
    %s1117 = scalar_lea.sflag [#allocation3], 1
    %1118 = vsyncpa %s1117, 1

</llo_original>
